<compile_context>
chip_gen: v6e
topology: v6e:2x2x1
jax: 0.10.0
libtpu: 0.0.40
codegen_flags: <defaults>
</compile_context>

<pallas_src>
import functools

import jax
import jax.numpy as jnp
from jax.experimental import pallas as pl
from jax.experimental.pallas import tpu as pltpu


def _round_up(n, m):
    return ((n + m - 1) // m) * m


def _choose_tile(b_pad, tb_max):
    """Largest 128-multiple that divides b_pad, <= tb_max, preferring >= 2
    grid steps whenever b_pad >= 256 (keeps both v7x TensorCores busy)."""
    tb_max = max(128, int(tb_max))
    k = b_pad // 128
    best = 128
    for d in range(1, k + 1):
        if k % d:
            continue
        tile = 128 * d
        if tile > tb_max:
            break
        if b_pad // tile >= 2 or b_pad == 128:
            best = tile
    return best


def _mlp_kernel(x_ref, w1_ref, b1_ref, w2_ref, b2_ref, w3_ref, b3_ref, o_ref):
    """relu(W1 @ x + b1) -> relu(W2 @ . + b2) -> <w3, .> + b3, batch on lanes."""
    xt = x_ref[...]                                            # (in_pad, TB)
    h1 = jnp.dot(w1_ref[...], xt, preferred_element_type=jnp.float32)
    h1 = jnp.maximum(h1 + b1_ref[...], 0.0)                    # ReLU; Dropout = identity (eval)
    h2 = jnp.dot(w2_ref[...], h1.astype(w2_ref.dtype),
                 preferred_element_type=jnp.float32)
    h2 = jnp.maximum(h2 + b2_ref[...], 0.0)                    # ReLU; Dropout = identity (eval)
    # Final Linear(H2 -> 1): broadcast-mul (VPU) + sublane reduce (XLU) rather
    # than a 1-row MXU matmul (shortens the per-step critical path).
    out = jnp.sum(h2 * w3_ref[...], axis=0, keepdims=True)     # (1, TB) f32
    o_ref[...] = out + b3_ref[0, 0]                            # scalar bias from SMEM


@functools.partial(jax.jit,
                   static_argnames=("tb_max", "use_bf16", "fallback_batch"))
def boston_housing_forward(x, params, *, tb_max=2048, use_bf16=False,
                           fallback_batch=0):
    """x: (B, input_dim). params: PyTorch-style {'fcN': (weight, bias)}."""
    w1, b1 = params["fc1"]          # (H1, in), (H1,)
    w2, b2 = params["fc2"]          # (H2, H1), (H2,)
    w3, b3 = params["fc3"]          # (1,  H2), (1,)
    B, in_dim = x.shape
    H1, H2 = w1.shape[0], w2.shape[0]

    if B <= fallback_batch:
        # Tiny batches: plain XLA fusion beats pallas_call fixed costs.
        h = jnp.maximum(x @ w1.T + b1, 0.0)
        h = jnp.maximum(h @ w2.T + b2, 0.0)
        return h @ w3.T + b3

    in_pad = _round_up(in_dim, 8)        # sublane alignment for x^T / W1
    b_pad = _round_up(B, 128)            # lane alignment only; never rounded up to TB
    TB = _choose_tile(b_pad, tb_max)
    grid = (b_pad // TB,)

    cdtype = jnp.bfloat16 if use_bf16 else jnp.float32

    # x^T with zero padding (single fused pass under jit).  Zero-padded feature
    # rows / weight columns are exact no-ops; padded batch columns carry
    # bias-propagated garbage and are sliced off below — never exposed.
    xt = jnp.zeros((in_pad, b_pad), cdtype).at[:in_dim, :B].set(
        x.T.astype(cdtype))
    w1p = jnp.zeros((H1, in_pad), cdtype).at[:, :in_dim].set(w1.astype(cdtype))
    w2c = w2.astype(cdtype)
    w3c = w3.reshape(H2, 1).astype(cdtype)          # column vector for VPU path
    b1c = b1.reshape(H1, 1).astype(jnp.float32)
    b2c = b2.reshape(H2, 1).astype(jnp.float32)
    b3s = b3.reshape(1, 1).astype(jnp.float32)

    def resident(a):                    # weights/biases stay VMEM-resident
        return pl.BlockSpec(a.shape, lambda i: (0,) * a.ndim)

    flops = 2 * b_pad * (in_pad * H1 + H1 * H2 + H2)
    bytes_accessed = (xt.size * xt.dtype.itemsize
                      + sum(a.size * a.dtype.itemsize
                            for a in (w1p, w2c, w3c, b1c, b2c, b3s))
                      + b_pad * 4)

    out = pl.pallas_call(
        _mlp_kernel,
        out_shape=jax.ShapeDtypeStruct((1, b_pad), jnp.float32),
        grid=grid,
        in_specs=[
            pl.BlockSpec((in_pad, TB), lambda i: (0, i)),   # x^T tile, double buffered
            resident(w1p), resident(b1c),
            resident(w2c), resident(b2c),
            resident(w3c),
            pl.BlockSpec((1, 1), lambda i: (0, 0),
                         memory_space=pltpu.MemorySpace.SMEM),
        ],
        out_specs=pl.BlockSpec((1, TB), lambda i: (0, i)),  # lane-dense stores
        compiler_params=pltpu.CompilerParams(
            dimension_semantics=("parallel",)),             # v7x: grid steps across TCs
        cost_estimate=pl.CostEstimate(flops=flops, transcendentals=0,
                                      bytes_accessed=bytes_accessed),
    )(xt, w1p, b1c, w2c, b2c, w3c, b3s)

    return out[:, :B].T                 # (B, 1); padded columns never escape


def init_params(key, input_dim, hidden_layers):
    """Deterministic init mimicking nn.Linear's U(-1/sqrt(in), 1/sqrt(in))."""
    dims = [input_dim] + list(hidden_layers) + [1]
    names = [f"fc{i + 1}" for i in range(len(dims) - 1)]
    params = {}
    for name, (din, dout) in zip(names, zip(dims[:-1], dims[1:])):
        key, kw, kb = jax.random.split(key, 3)
        bound = 1.0 / (din ** 0.5)
        w = jax.random.uniform(kw, (dout, din), jnp.float32, -bound, bound)
        b = jax.random.uniform(kb, (dout,), jnp.float32, -bound, bound)
        params[name] = (w, b)
    return params


def reference_forward(x, params):
    """Plain-JAX reference for correctness checking (eval-mode dropout)."""
    w1, b1 = params["fc1"]
    w2, b2 = params["fc2"]
    w3, b3 = params["fc3"]
    h = jnp.maximum(x @ w1.T + b1, 0.0)
    h = jnp.maximum(h @ w2.T + b2, 0.0)
    return h @ w3.T + b3


if __name__ == "__main__":
    key = jax.random.PRNGKey(0)
    input_dim = 13                 # Boston Housing feature count
    hidden_layers = [32, 16]
    dropout_rate = 0.2             # nn.Dropout is identity in eval mode

    kx, kx2, kp = jax.random.split(key, 3)
    params = init_params(kp, input_dim, hidden_layers)

    # Small batch consistent with the module spec (single grid step).
    x_small = jax.random.normal(kx, (8, input_dim), dtype=jnp.float32)
    out_small = jax.block_until_ready(boston_housing_forward(x_small, params))
    ref_small = reference_forward(x_small, params)
    assert out_small.shape == (8, 1)
    assert jnp.allclose(out_small, ref_small, atol=1e-5, rtol=1e-5)

    # Ragged batch: exercises lane padding (300 -> 384) and a 3-step grid.
    x_big = jax.random.normal(kx2, (300, input_dim), dtype=jnp.float32)
    out_big = jax.block_until_ready(boston_housing_forward(x_big, params))
    ref_big = reference_forward(x_big, params)
    assert out_big.shape == (300, 1)
    assert jnp.allclose(out_big, ref_big, atol=1e-5, rtol=1e-5)

    print("KERNEL_OK")
</pallas_src>

<mosaic_0001>
module attributes {stable_mosaic.version = 11 : i64} {
  func.func @_mlp_kernel(%arg0: i32, %arg1: memref<16x128xf32, #tpu.memory_space<vmem>>, %arg2: memref<32x16xf32, #tpu.memory_space<vmem>>, %arg3: memref<32x1xf32, #tpu.memory_space<vmem>>, %arg4: memref<16x32xf32, #tpu.memory_space<vmem>>, %arg5: memref<16x1xf32, #tpu.memory_space<vmem>>, %arg6: memref<16x1xf32, #tpu.memory_space<vmem>>, %arg7: memref<1x1xf32, #tpu.memory_space<smem>>, %arg8: memref<1x128xf32, #tpu.memory_space<vmem>>) attributes {dimension_semantics = [#tpu.dimension_semantics<parallel>], iteration_bounds = array<i64: 1>, scalar_prefetch = 0 : i64, scratch_operands = 0 : i64, tpu.core_type = #tpu.core_type<tc>, window_params = [{transform_indices = @transform_0, window_bounds = array<i64: 16, 128>}, {pipeline_mode = #tpu.pipeline_mode<synchronous>, transform_indices = @transform_1, window_bounds = array<i64: 32, 16>}, {pipeline_mode = #tpu.pipeline_mode<synchronous>, transform_indices = @transform_2, window_bounds = array<i64: 32, 1>}, {pipeline_mode = #tpu.pipeline_mode<synchronous>, transform_indices = @transform_3, window_bounds = array<i64: 16, 32>}, {pipeline_mode = #tpu.pipeline_mode<synchronous>, transform_indices = @transform_4, window_bounds = array<i64: 16, 1>}, {pipeline_mode = #tpu.pipeline_mode<synchronous>, transform_indices = @transform_5, window_bounds = array<i64: 16, 1>}, {transform_indices = @transform_6, window_bounds = array<i64: 1, 1>}, {transform_indices = @transform_7, window_bounds = array<i64: 1, 128>}]} {
    %c0 = arith.constant 0 : index
    %c0_0 = arith.constant 0 : index
    %0 = vector.load %arg1[%c0, %c0_0] : memref<16x128xf32, #tpu.memory_space<vmem>>, vector<16x128xf32>
    %c0_1 = arith.constant 0 : index
    %c0_2 = arith.constant 0 : index
    %1 = vector.load %arg2[%c0_1, %c0_2] : memref<32x16xf32, #tpu.memory_space<vmem>>, vector<32x16xf32>
    %cst = arith.constant dense<0.000000e+00> : vector<32x128xf32>
    %2 = tpu.matmul %1, %0, %cst {dimension_numbers = #tpu.dot_dimension_numbers<[1], [0], [0], [1], [0, 0, 1, 1], [], []>} : vector<32x16xf32>, vector<16x128xf32>, vector<32x128xf32> -> vector<32x128xf32>
    %c0_3 = arith.constant 0 : index
    %c0_4 = arith.constant 0 : index
    %3 = vector.load %arg3[%c0_3, %c0_4] : memref<32x1xf32, #tpu.memory_space<vmem>>, vector<32x1xf32>
    %4 = vector.broadcast %3 : vector<32x1xf32> to vector<32x128xf32>
    %5 = arith.addf %2, %4 : vector<32x128xf32>
    %cst_5 = arith.constant 0.000000e+00 : f32
    %6 = vector.broadcast %cst_5 : f32 to vector<32x128xf32>
    %7 = arith.maximumf %5, %6 : vector<32x128xf32>
    %c0_6 = arith.constant 0 : index
    %c0_7 = arith.constant 0 : index
    %8 = vector.load %arg4[%c0_6, %c0_7] : memref<16x32xf32, #tpu.memory_space<vmem>>, vector<16x32xf32>
    %cst_8 = arith.constant dense<0.000000e+00> : vector<16x128xf32>
    %9 = tpu.matmul %8, %7, %cst_8 {dimension_numbers = #tpu.dot_dimension_numbers<[1], [0], [0], [1], [0, 0, 1, 1], [], []>} : vector<16x32xf32>, vector<32x128xf32>, vector<16x128xf32> -> vector<16x128xf32>
    %c0_9 = arith.constant 0 : index
    %c0_10 = arith.constant 0 : index
    %10 = vector.load %arg5[%c0_9, %c0_10] : memref<16x1xf32, #tpu.memory_space<vmem>>, vector<16x1xf32>
    %11 = vector.broadcast %10 : vector<16x1xf32> to vector<16x128xf32>
    %12 = arith.addf %9, %11 : vector<16x128xf32>
    %cst_11 = arith.constant 0.000000e+00 : f32
    %13 = vector.broadcast %cst_11 : f32 to vector<16x128xf32>
    %14 = arith.maximumf %12, %13 : vector<16x128xf32>
    %c0_12 = arith.constant 0 : index
    %c0_13 = arith.constant 0 : index
    %15 = vector.load %arg6[%c0_12, %c0_13] : memref<16x1xf32, #tpu.memory_space<vmem>>, vector<16x1xf32>
    %16 = vector.broadcast %15 : vector<16x1xf32> to vector<16x128xf32>
    %17 = arith.mulf %14, %16 : vector<16x128xf32>
    %cst_14 = arith.constant dense<0.000000e+00> : vector<128xf32>
    %18 = vector.multi_reduction <add>, %17, %cst_14 [0] : vector<16x128xf32> to vector<128xf32>
    %19 = vector.shape_cast %18 : vector<128xf32> to vector<1x128xf32>
    %c0_15 = arith.constant 0 : index
    %c0_16 = arith.constant 0 : index
    %20 = memref.load %arg7[%c0_15, %c0_16] : memref<1x1xf32, #tpu.memory_space<smem>>
    %21 = vector.broadcast %20 : f32 to vector<1x128xf32>
    %22 = arith.addf %19, %21 : vector<1x128xf32>
    %c0_17 = arith.constant 0 : index
    %c0_18 = arith.constant 0 : index
    %23 = vector.load %arg8[%c0_17, %c0_18] : memref<1x128xf32, #tpu.memory_space<vmem>>, vector<1x128xf32>
    tpu.vector_store %arg8[%c0_17, %c0_18], %22 {strides = array<i32>} : memref<1x128xf32, #tpu.memory_space<vmem>>, vector<1x128xf32>,
    return
  }
  func.func @transform_0(%arg0: i32) -> (i32, i32) {
    %c0_i32 = arith.constant 0 : i32
    %c0_i32_0 = arith.constant 0 : i32
    return %c0_i32, %arg0 : i32, i32
  }
  func.func @transform_1(%arg0: i32) -> (i32, i32) {
    %c0_i32 = arith.constant 0 : i32
    %c0_i32_0 = arith.constant 0 : i32
    %c0_i32_1 = arith.constant 0 : i32
    return %c0_i32, %c0_i32_0 : i32, i32
  }
  func.func @transform_2(%arg0: i32) -> (i32, i32) {
    %c0_i32 = arith.constant 0 : i32
    %c0_i32_0 = arith.constant 0 : i32
    %c0_i32_1 = arith.constant 0 : i32
    return %c0_i32, %c0_i32_0 : i32, i32
  }
  func.func @transform_3(%arg0: i32) -> (i32, i32) {
    %c0_i32 = arith.constant 0 : i32
    %c0_i32_0 = arith.constant 0 : i32
    %c0_i32_1 = arith.constant 0 : i32
    return %c0_i32, %c0_i32_0 : i32, i32
  }
  func.func @transform_4(%arg0: i32) -> (i32, i32) {
    %c0_i32 = arith.constant 0 : i32
    %c0_i32_0 = arith.constant 0 : i32
    %c0_i32_1 = arith.constant 0 : i32
    return %c0_i32, %c0_i32_0 : i32, i32
  }
  func.func @transform_5(%arg0: i32) -> (i32, i32) {
    %c0_i32 = arith.constant 0 : i32
    %c0_i32_0 = arith.constant 0 : i32
    %c0_i32_1 = arith.constant 0 : i32
    return %c0_i32, %c0_i32_0 : i32, i32
  }
  func.func @transform_6(%arg0: i32) -> (i32, i32) {
    %c0_i32 = arith.constant 0 : i32
    %c0_i32_0 = arith.constant 0 : i32
    %c0_i32_1 = arith.constant 0 : i32
    return %c0_i32, %c0_i32_0 : i32, i32
  }
  func.func @transform_7(%arg0: i32) -> (i32, i32) {
    %c0_i32 = arith.constant 0 : i32
    %c0_i32_0 = arith.constant 0 : i32
    return %c0_i32, %arg0 : i32, i32
  }
}

</mosaic_0001>

<llo_original>
// kernel: boston_housing_forward.1
$region0: #{boston_housing_forward.1}
  #allocation0 [shape = 'u32[]', space=smem, size = 0x4, offset = 0x4, fixed_abs, tag = 'smem constant byte address 0x4 - core index']
  #allocation1 [shape = 'u32[144,128]{1,0:T(1,128)}', space=vmem, size = 0x12000, scoped, tag = 'internal scratch']
  #allocation2 [shape = 'f32[1,1]{1,0:T(1,128)S(6)}', space=smem, size = 0x200, scoped, tag = 'scoped memory for boston_housing_forward.1']
  %s0 = inlined_call_operand.vmem [shape: f32[16,128], index: 0, kind: input, shape index: {}]
  %s1 = inlined_call_operand.vmem [shape: f32[32,16], index: 1, kind: input, shape index: {}]
  %s2 = inlined_call_operand.vmem [shape: f32[32,1], index: 2, kind: input, shape index: {}]
  %s3 = inlined_call_operand.vmem [shape: f32[16,32], index: 3, kind: input, shape index: {}]
  %s4 = inlined_call_operand.vmem [shape: f32[16,1], index: 4, kind: input, shape index: {}]
  %s5 = inlined_call_operand.vmem [shape: f32[16,1], index: 5, kind: input, shape index: {}]
  %s6 = inlined_call_operand.<no memory space> [shape: f32[1,1], index: 6, kind: input, shape index: {}]
  %s7 = inlined_call_operand.vmem [shape: f32[1,128], index: 7, kind: output, shape index: {}]
  %s8 = sld [smem:[#allocation0]]
  $region38: #{boston_housing_forward.1} parent=0
    _
  %s10 = ssub.s32 1, %s8
  %s11 = scalar_select 0, %s10, %s8
  %12 = sst [smem:[#allocation2]] %s6
  // Predicated region
  $region2: #{boston_housing_forward.1} parent=0 // pred_check
    _
  $region3: #{boston_housing_forward.1} parent=0 // pred_check_branch
    %14 = sbr.rel (0) target = $region5
  $region4: #{boston_housing_forward.1} parent=0 // pred_region
    _
  $region5: #{boston_housing_forward.1} parent=0 // pred_fallthru
    _
  // Predicated region
  $region6: #{boston_housing_forward.1} parent=0 // pred_check
    _
  $region7: #{boston_housing_forward.1} parent=0 // pred_check_branch
    %16 = sbr.rel (0) target = $region9
  $region8: #{boston_housing_forward.1} parent=0 // pred_region
    _
  $region9: #{boston_housing_forward.1} parent=0 // pred_fallthru
    _
  // Predicated region
  $region10: #{boston_housing_forward.1} parent=0 // pred_check
    _
  $region11: #{boston_housing_forward.1} parent=0 // pred_check_branch
    %18 = sbr.rel (0) target = $region13
  $region12: #{boston_housing_forward.1} parent=0 // pred_region
    _
  $region13: #{boston_housing_forward.1} parent=0 // pred_fallthru
    _
  // Predicated region
  $region14: #{boston_housing_forward.1} parent=0 // pred_check
    _
  $region15: #{boston_housing_forward.1} parent=0 // pred_check_branch
    %20 = sbr.rel (0) target = $region17
  $region16: #{boston_housing_forward.1} parent=0 // pred_region
    _
  $region17: #{boston_housing_forward.1} parent=0 // pred_fallthru
    _
  // Predicated region
  $region18: #{boston_housing_forward.1} parent=0 // pred_check
    _
  $region19: #{boston_housing_forward.1} parent=0 // pred_check_branch
    %22 = sbr.rel (0) target = $region21
  $region20: #{boston_housing_forward.1} parent=0 // pred_region
    _
  $region21: #{boston_housing_forward.1} parent=0 // pred_fallthru
    _
  // Predicated region
  $region22: #{boston_housing_forward.1} parent=0 // pred_check
    _
  $region23: #{boston_housing_forward.1} parent=0 // pred_check_branch
    %24 = sbr.rel (0) target = $region25
  $region24: #{boston_housing_forward.1} parent=0 // pred_region
    _
  $region25: #{boston_housing_forward.1} parent=0 // pred_fallthru
    _
  // Predicated region
  $region26: #{boston_housing_forward.1} parent=0 // pred_check
    _
  $region27: #{boston_housing_forward.1} parent=0 // pred_check_branch
    %26 = sbr.rel (0) target = $region29
  $region28: #{boston_housing_forward.1} parent=0 // pred_region
    _
  $region29: #{boston_housing_forward.1} parent=0 // pred_fallthru
    _
  %v27 = vld [vmem:[%s0] sm:$0xff]
  %v28 = vld [vmem:[%s0 + $0x8] sm:$0xff]
  %v29 = vld [vmem:[%s1] sm:$0xff]
  %v30 = vld [vmem:[%s1 + $0x8] sm:$0xff]
  %v31 = vld [vmem:[%s1 + $0x10] sm:$0xff]
  %v32 = vld [vmem:[%s1 + $0x18] sm:$0xff]
  %v33 = vld [vmem:[%s2] sm:$0xff]
  %v34 = vld [vmem:[%s2 + $0x8] sm:$0xff]
  %v35 = vld [vmem:[%s2 + $0x10] sm:$0xff]
  %v36 = vld [vmem:[%s2 + $0x18] sm:$0xff]
  %38 = vset.pattern.permute.xlu0 0
  %39 = vperm.xlu0 %38, %v33
  %v40 = vpop.permute.xlu0 %39
  %43 = vset.pattern.permute.xlu0 0
  %44 = vperm.xlu0 %43, %v34
  %v45 = vpop.permute.xlu0 %44
  %48 = vset.pattern.permute.xlu0 0
  %49 = vperm.xlu0 %48, %v35
  %v50 = vpop.permute.xlu0 %49
  %53 = vset.pattern.permute.xlu0 0
  %54 = vperm.xlu0 %53, %v36
  %v55 = vpop.permute.xlu0 %54
  %vm57 = vcmask 130048
  %v59 = vsel %vm57, %v29, 0
  %v62 = vsel %vm57, %v30, 0
  %v65 = vsel %vm57, %v31, 0
  %v68 = vsel %vm57, %v32, 0
  %70 = vmatprep.subr.mxu0 0.0
  %71 = vmatpush1.msra.mxu0 0.0
  %72 = vmatprep.subr.mxu0 0.0
  %73 = vmatpush1.msra.mxu0 0.0
  %74 = vmatprep.subr.mxu0 0.0
  %75 = vmatpush1.msra.mxu0 0.0
  %76 = vmatprep.subr.mxu0 0.0
  %77 = vmatpush1.msra.mxu0 0.0
  %78 = vmatprep.subr.mxu0 0.0
  %79 = vmatpush1.msra.mxu0 0.0
  %80 = vmatprep.subr.mxu0 0.0
  %81 = vmatpush1.msra.mxu0 0.0
  %82 = vmatprep.subr.mxu0 0.0
  %83 = vmatpush1.msra.mxu0 0.0
  %84 = vmatprep.subr.mxu0 0.0
  %85 = vmatpush1.msra.mxu0 0.0
  %86 = vmatprep.subr.mxu0 0.0
  %87 = vmatpush1.msra.mxu0 0.0
  %88 = vmatprep.subr.mxu0 0.0
  %89 = vmatpush1.msra.mxu0 0.0
  %90 = vmatprep.subr.mxu0 0.0
  %91 = vmatpush1.msra.mxu0 0.0
  %92 = vmatprep.subr.mxu0 0.0
  %93 = vmatpush1.msra.mxu0 0.0
  %94 = vmatprep.subr.mxu0 0.0
  %95 = vmatpush1.msra.mxu0 0.0
  %96 = vmatprep.subr.mxu0 0.0
  %97 = vmatpush1.msra.mxu0 0.0
  %98 = vmatprep.subr.mxu0 0.0
  %99 = vmatpush1.msra.mxu0 %v28
  %100 = vmatprep.subr.mxu0 0.0
  %101 = vmatpush1.msra.mxu0 %v27
  %102 = vmatprep.subr.mxu0 0.0
  %103 = vmatpush2.msra.mxu0 0.0
  %104 = vmatprep.subr.mxu0 0.0
  %105 = vmatpush2.msra.mxu0 0.0
  %106 = vmatprep.subr.mxu0 0.0
  %107 = vmatpush2.msra.mxu0 0.0
  %108 = vmatprep.subr.mxu0 0.0
  %109 = vmatpush2.msra.mxu0 0.0
  %110 = vmatprep.subr.mxu0 0.0
  %111 = vmatpush2.msra.mxu0 0.0
  %112 = vmatprep.subr.mxu0 0.0
  %113 = vmatpush2.msra.mxu0 0.0
  %114 = vmatprep.subr.mxu0 0.0
  %115 = vmatpush2.msra.mxu0 0.0
  %116 = vmatprep.subr.mxu0 0.0
  %117 = vmatpush2.msra.mxu0 0.0
  %118 = vmatprep.subr.mxu0 0.0
  %119 = vmatpush2.msra.mxu0 0.0
  %120 = vmatprep.subr.mxu0 0.0
  %121 = vmatpush2.msra.mxu0 0.0
  %122 = vmatprep.subr.mxu0 0.0
  %123 = vmatpush2.msra.mxu0 0.0
  %124 = vmatprep.subr.mxu0 0.0
  %125 = vmatpush2.msra.mxu0 0.0
  %126 = vmatprep.subr.mxu0 0.0
  %127 = vmatpush2.msra.mxu0 0.0
  %128 = vmatprep.subr.mxu0 0.0
  %129 = vmatpush2.msra.mxu0 0.0
  %130 = vmatprep.subr.mxu0 0.0
  %131 = vmatpush2.msra.mxu0 0.0
  %132 = vmatprep.subr.mxu0 0.0
  %133 = vmatpush2.msra.mxu0 0.0
  %134 = vmatprep.mubr.f32.mxu0 0.0
  %135 = vmatmul.mubr.f32.gmra.mxu0 %v59
  %v136 = vpop.f32.mrf.mxu0
  %v137 = vadd.f32 %v40, %v136
  %v138 = vpop.f32.mrf.mxu0
  %139 = vmatprep.mubr.f32.mxu0 0.0
  %140 = vmatmul.mubr.f32.gmra.mxu0 %v62
  %v141 = vpop.f32.mrf.mxu0
  %v142 = vadd.f32 %v45, %v141
  %v143 = vpop.f32.mrf.mxu0
  %144 = vmatprep.mubr.f32.mxu0 0.0
  %145 = vmatmul.mubr.f32.gmra.mxu0 %v65
  %v146 = vpop.f32.mrf.mxu0
  %v147 = vadd.f32 %v50, %v146
  %v148 = vpop.f32.mrf.mxu0
  %149 = vmatprep.mubr.f32.mxu0 0.0
  %150 = vmatmul.mubr.f32.gmra.mxu0 %v68
  %v151 = vpop.f32.mrf.mxu0
  %v152 = vadd.f32 %v55, %v151
  %v153 = vpop.f32.mrf.mxu0
  %154 = vdwg.mxu0
  %v155 = vmax.f32 %v137, 0.0
  %v156 = vmax.f32 %v142, 0.0
  %v157 = vmax.f32 %v147, 0.0
  %v158 = vmax.f32 %v152, 0.0
  %v159 = vld [vmem:[%s3] sm:$0xff]
  %v160 = vld [vmem:[%s3 + $0x8] sm:$0xff]
  %v161 = vld [vmem:[%s4] sm:$0xff]
  %v162 = vld [vmem:[%s4 + $0x8] sm:$0xff]
  %164 = vset.pattern.permute.xlu0 0
  %165 = vperm.xlu0 %164, %v161
  %v166 = vpop.permute.xlu0 %165
  %169 = vset.pattern.permute.xlu0 0
  %170 = vperm.xlu0 %169, %v162
  %v171 = vpop.permute.xlu0 %170
  %vm173 = vcmask 261120
  %v175 = vsel %vm173, %v159, 0
  %v178 = vsel %vm173, %v160, 0
  %180 = vmatprep.subr.mxu0 0.0
  %181 = vmatpush1.msra.mxu0 0.0
  %182 = vmatprep.subr.mxu0 0.0
  %183 = vmatpush1.msra.mxu0 0.0
  %184 = vmatprep.subr.mxu0 0.0
  %185 = vmatpush1.msra.mxu0 0.0
  %186 = vmatprep.subr.mxu0 0.0
  %187 = vmatpush1.msra.mxu0 0.0
  %188 = vmatprep.subr.mxu0 0.0
  %189 = vmatpush1.msra.mxu0 0.0
  %190 = vmatprep.subr.mxu0 0.0
  %191 = vmatpush1.msra.mxu0 0.0
  %192 = vmatprep.subr.mxu0 0.0
  %193 = vmatpush1.msra.mxu0 0.0
  %194 = vmatprep.subr.mxu0 0.0
  %195 = vmatpush1.msra.mxu0 0.0
  %196 = vmatprep.subr.mxu0 0.0
  %197 = vmatpush1.msra.mxu0 0.0
  %198 = vmatprep.subr.mxu0 0.0
  %199 = vmatpush1.msra.mxu0 0.0
  %200 = vmatprep.subr.mxu0 0.0
  %201 = vmatpush1.msra.mxu0 0.0
  %202 = vmatprep.subr.mxu0 0.0
  %203 = vmatpush1.msra.mxu0 0.0
  %204 = vmatprep.subr.mxu0 0.0
  %205 = vmatpush1.msra.mxu0 %v158
  %206 = vmatprep.subr.mxu0 0.0
  %207 = vmatpush1.msra.mxu0 %v157
  %208 = vmatprep.subr.mxu0 0.0
  %209 = vmatpush1.msra.mxu0 %v156
  %210 = vmatprep.subr.mxu0 0.0
  %211 = vmatpush1.msra.mxu0 %v155
  %212 = vmatprep.subr.mxu0 0.0
  %213 = vmatpush2.msra.mxu0 0.0
  %214 = vmatprep.subr.mxu0 0.0
  %215 = vmatpush2.msra.mxu0 0.0
  %216 = vmatprep.subr.mxu0 0.0
  %217 = vmatpush2.msra.mxu0 0.0
  %218 = vmatprep.subr.mxu0 0.0
  %219 = vmatpush2.msra.mxu0 0.0
  %220 = vmatprep.subr.mxu0 0.0
  %221 = vmatpush2.msra.mxu0 0.0
  %222 = vmatprep.subr.mxu0 0.0
  %223 = vmatpush2.msra.mxu0 0.0
  %224 = vmatprep.subr.mxu0 0.0
  %225 = vmatpush2.msra.mxu0 0.0
  %226 = vmatprep.subr.mxu0 0.0
  %227 = vmatpush2.msra.mxu0 0.0
  %228 = vmatprep.subr.mxu0 0.0
  %229 = vmatpush2.msra.mxu0 0.0
  %230 = vmatprep.subr.mxu0 0.0
  %231 = vmatpush2.msra.mxu0 0.0
  %232 = vmatprep.subr.mxu0 0.0
  %233 = vmatpush2.msra.mxu0 0.0
  %234 = vmatprep.subr.mxu0 0.0
  %235 = vmatpush2.msra.mxu0 0.0
  %236 = vmatprep.subr.mxu0 0.0
  %237 = vmatpush2.msra.mxu0 0.0
  %238 = vmatprep.subr.mxu0 0.0
  %239 = vmatpush2.msra.mxu0 0.0
  %240 = vmatprep.subr.mxu0 0.0
  %241 = vmatpush2.msra.mxu0 0.0
  %242 = vmatprep.subr.mxu0 0.0
  %243 = vmatpush2.msra.mxu0 0.0
  %244 = vmatprep.mubr.f32.mxu0 0.0
  %245 = vmatmul.mubr.f32.gmra.mxu0 %v175
  %v246 = vpop.f32.mrf.mxu0
  %v247 = vadd.f32 %v166, %v246
  %v248 = vpop.f32.mrf.mxu0
  %249 = vmatprep.mubr.f32.mxu0 0.0
  %250 = vmatmul.mubr.f32.gmra.mxu0 %v178
  %v251 = vpop.f32.mrf.mxu0
  %v252 = vadd.f32 %v171, %v251
  %v253 = vpop.f32.mrf.mxu0
  %254 = vdwg.mxu0
  %v255 = vmax.f32 %v247, 0.0
  %v256 = vmax.f32 %v252, 0.0
  %v257 = vld [vmem:[%s5] sm:$0xff]
  %v258 = vld [vmem:[%s5 + $0x8] sm:$0xff]
  %260 = vset.pattern.permute.xlu0 0
  %261 = vperm.xlu0 %260, %v257
  %v262 = vpop.permute.xlu0 %261
  %265 = vset.pattern.permute.xlu0 0
  %266 = vperm.xlu0 %265, %v258
  %v267 = vpop.permute.xlu0 %266
  %v269 = vmul.f32 %v255, %v262
  %v270 = vmul.f32 %v256, %v267
  %v271 = vadd.f32 %v269, %v270
  %v272 = vrot.slane %v271, 4
  %v273 = vadd.f32 %v271, %v272
  %v274 = vrot.slane %v273, 2
  %v275 = vadd.f32 %v273, %v274
  %v276 = vrot.slane %v275, 1
  %v277 = vadd.f32 %v275, %v276
  %s278 = sld [smem:[#allocation2]]
  %v279 = vstv %s278
  %v280 = vadd.f32 %v277, %v279
  %281 = vst [vmem:[%s7] sm:$0x1] %v280
  // Predicated region
  $region30: #{boston_housing_forward.1} parent=0 // pred_check
    _
  $region31: #{boston_housing_forward.1} parent=0 // pred_check_branch
    %283 = sbr.rel (0) target = $region33
  $region32: #{boston_housing_forward.1} parent=0 // pred_region
    _
  $region33: #{boston_housing_forward.1} parent=0 // pred_fallthru
    _
  // Predicated region
  $region34: #{boston_housing_forward.1} parent=0 // pred_check
    _
  $region35: #{boston_housing_forward.1} parent=0 // pred_check_branch
    %285 = sbr.rel (0) target = $region37
  $region36: #{boston_housing_forward.1} parent=0 // pred_region
    _
  $region37: #{boston_housing_forward.1} parent=0 // pred_fallthru
    _

</llo_original>
